<compile_context>
chip_gen: v5e
topology: v5e:2x2
jax: 0.10.0
libtpu: 0.0.40
codegen_flags: <defaults>
</compile_context>

<pallas_src>
import functools

import jax
import jax.numpy as jnp
from jax import lax
from jax.experimental import pallas as pl
from jax.experimental.pallas import tpu as pltpu


def _round_up(x, m):
    return -(-x // m) * m


# ---------------------------------------------------------------------------
# Kernel 1: WeightAndSum readout
# ---------------------------------------------------------------------------
def weight_and_sum_kernel(feats_ref, w_ref, b_ref, out_ref, *, n_nodes):
    """feats_ref: (Gb*N, Dp) bf16  -- Gb graphs' node features, flattened
       w_ref:     (T1, Dp)  bf16   -- T1 = task_num + 1 weighting heads
       b_ref:     (1, T1)   f32    -- head biases
       out_ref:   (1, Gb, T1*Dp) f32 -- lane-dense output slab
    """
    gb_n, dp = feats_ref.shape
    gb = gb_n // n_nodes
    t1 = w_ref.shape[0]

    x2 = feats_ref[...]                                    # (Gb*N, Dp) bf16, straight from DMA

    # All T1 Linear(in_feats, 1) heads for all Gb graphs as ONE MXU-shaped GEMM
    # (bf16 operands, f32 accumulation).  dot_general carries the contraction on
    # dim 1 of both operands -- no .T materialisation / XLU transpose.
    logits = lax.dot_general(
        x2, w_ref[...],
        dimension_numbers=(((1,), (1,)), ((), ())),
        preferred_element_type=jnp.float32) + b_ref[...]   # (Gb*N, T1) f32
    atom_w = jax.nn.sigmoid(logits)                        # keep elementwise in f32 (v5e: no bf16 VPU/EUP)

    # Per-graph weighted node sums.  N is a multiple of 8, so these reshapes are
    # pure sublane re-grouping (layout no-ops).
    aw = atom_w.reshape(gb, n_nodes, t1)                   # (Gb, N, T1) f32
    xf = x2.astype(jnp.float32).reshape(gb, n_nodes, dp)   # (Gb, N, Dp) f32 (hoisted out of head loop)

    # T1 is tiny (task_num + 1): an MXU matmul with T1 output rows runs at a few %
    # utilisation, so do T1 VPU multiplies + sublane reduces instead; each head is
    # written to its own 128-aligned lane slab -> unmasked full-width stores.
    for t in range(t1):
        head = jnp.sum(aw[:, :, t:t + 1] * xf, axis=1)     # (Gb, Dp) f32
        out_ref[0, :, t * dp:(t + 1) * dp] = head


def _pick_graph_block(G, Np, Dp, T1,
                      target_rows=256, vmem_budget_bytes=8 * 1024 * 1024):
    """Graphs per grid step: enough GEMM rows to fill the MXU (256 for v6e/v7x, 128
    already saturates v5e), bounded by a conservative working-set budget that fits
    every generation's *default* scoped-VMEM limit (so no vmem_limit_bytes needed,
    incl. v7x's 64 MiB physical VMEM)."""
    gb = min(G, max(1, -(-target_rows // Np)))

    def working_set(g):
        in_blk = g * Np * Dp * 2           # bf16 feats block
        out_blk = g * T1 * Dp * 4          # f32 output slab
        f32_tmp = g * Np * Dp * 4          # f32 copy used by the VPU head reduction
        return 2 * in_blk + 2 * out_blk + f32_tmp   # in/out double-buffered

    while gb > 1 and working_set(gb) > vmem_budget_bytes:
        gb = max(1, gb // 2)
    return gb


def weight_and_sum(feats, W, b):
    """feats: [G, N, D] float, W: [T1, D], b: [T1] -> [G, T1, D] float32."""
    G, N, D = feats.shape
    T1 = W.shape[0]

    # bf16 end-to-end: halves HBM traffic of this memory-bound readout; MXU is
    # natively bf16 on v5e/v6e/v7x.  Only accumulation / sigmoid / output are f32.
    feats16 = feats.astype(jnp.bfloat16)
    W16 = W.astype(jnp.bfloat16)
    b2 = b.reshape(1, T1).astype(jnp.float32)

    # Pad D to a lane multiple (128) and N to a sublane multiple (8) once in HBM so
    # every DMA / vector op / in-kernel reshape is unmasked.  Zero padding adds 0.
    Dp = _round_up(D, 128)
    Np = _round_up(N, 8)
    if (Np, Dp) != (N, D):
        feats16 = jnp.pad(feats16, ((0, 0), (0, Np - N), (0, Dp - D)))
    if Dp != D:
        W16 = jnp.pad(W16, ((0, 0), (0, Dp - D)))

    # Batch Gb graphs per grid step (amortises ~0.35us/step pipeline overhead and
    # fills the MXU); pad G so the grid tiles evenly (padded graphs are all-zero and
    # are sliced away below).  Graph blocks are independent -> "parallel" grid axis
    # (lets v7x shard blocks across its 2 TensorCores; neutral on v5e/v6e).
    Gb = _pick_graph_block(G, Np, Dp, T1)
    Gpad = _round_up(G, Gb)
    if Gpad != G:
        feats16 = jnp.pad(feats16, ((0, Gpad - G), (0, 0), (0, 0)))
    n_blocks = Gpad // Gb
    feats2d = feats16.reshape(Gpad * Np, Dp)    # free reshape: kernel reads (Gb*N, Dp) slabs

    cost = pl.CostEstimate(
        flops=2 * 2 * Gpad * Np * Dp * T1,                       # two contractions
        transcendentals=Gpad * Np * T1,                          # sigmoid
        bytes_accessed=Gpad * Np * Dp * 2 + T1 * Dp * 2 + Gpad * T1 * Dp * 4)

    out = pl.pallas_call(
        functools.partial(weight_and_sum_kernel, n_nodes=Np),
        out_shape=jax.ShapeDtypeStruct((n_blocks, Gb, T1 * Dp), jnp.float32),
        grid_spec=pltpu.PrefetchScalarGridSpec(
            num_scalar_prefetch=0,
            grid=(n_blocks,),
            in_specs=[
                pl.BlockSpec((Gb * Np, Dp), lambda g: (g, 0)),   # Gb graphs' node feats
                pl.BlockSpec((T1, Dp), lambda g: (0, 0)),        # all weighting heads
                pl.BlockSpec((1, T1), lambda g: (0, 0)),         # head biases
            ],
            # Lane-dense output: last dim T1*Dp is a multiple of 128 -> no masked
            # partial stores.  Reshaped back to (G, T1, D) in the wrapper.
            out_specs=pl.BlockSpec((1, Gb, T1 * Dp), lambda g: (g, 0, 0)),
        ),
        compiler_params=pltpu.CompilerParams(
            dimension_semantics=("parallel",)),
        cost_estimate=cost,
    )(feats2d, W16, b2)

    return out.reshape(Gpad, T1, Dp)[:G, :, :D]


# ---------------------------------------------------------------------------
# Kernel 2: per-task classifier head (fc1 -> fc2 -> fc3 -> output_layer)
# ---------------------------------------------------------------------------
def mlp_head_kernel(x_ref, a1_ref, b1_ref, a2_ref, b2_ref, a3_ref, b3_ref,
                    ao_ref, bo_ref, out_ref):
    """One task: 3x (Linear -> ReLU -> [folded eval-BatchNorm]) -> Linear(H, 1).
       x (1,G,D) bf16; aK (1,*,H) bf16; bK (1,1,H) f32; ao (1,1,H)/bo (1,1,1) f32;
       out (1,G,1) f32."""
    x = x_ref[0]                                                           # (G, D) bf16
    h = jnp.maximum(jnp.dot(x, a1_ref[0],
                            preferred_element_type=jnp.float32) + b1_ref[0], 0.0)
    h = jnp.maximum(jnp.dot(h.astype(jnp.bfloat16), a2_ref[0],
                            preferred_element_type=jnp.float32) + b2_ref[0], 0.0)
    h = jnp.maximum(jnp.dot(h.astype(jnp.bfloat16), a3_ref[0],
                            preferred_element_type=jnp.float32) + b3_ref[0], 0.0)
    # output_layer Linear(H, 1): a 1-column MXU matmul would waste the array ->
    # VPU multiply + lane reduce.
    out_ref[0] = jnp.sum(h * ao_ref[0], axis=1, keepdims=True) + bo_ref[0]  # (G, 1)


def mlp_heads(mol_feats, fp):
    """mol_feats: [T, G, D] f32 per-task graph embeddings -> prediction_all [G, T]."""
    T, G, D = mol_feats.shape
    H = fp["A1"].shape[2]
    x16 = mol_feats.astype(jnp.bfloat16)
    spec3 = lambda shape: pl.BlockSpec(shape, lambda t: (t, 0, 0))
    out = pl.pallas_call(
        mlp_head_kernel,
        out_shape=jax.ShapeDtypeStruct((T, G, 1), jnp.float32),
        grid_spec=pltpu.PrefetchScalarGridSpec(
            num_scalar_prefetch=0,
            grid=(T,),
            in_specs=[
                spec3((1, G, D)),
                spec3((1, D, H)), spec3((1, 1, H)),
                spec3((1, H, H)), spec3((1, 1, H)),
                spec3((1, H, H)), spec3((1, 1, H)),
                spec3((1, 1, H)), spec3((1, 1, 1)),
            ],
            out_specs=spec3((1, G, 1)),
        ),
        compiler_params=pltpu.CompilerParams(dimension_semantics=("parallel",)),
    )(x16, fp["A1"], fp["b1"], fp["A2"], fp["b2"],
      fp["A3"], fp["b3"], fp["Ao"], fp["bo"])
    return out[:, :, 0].T                                                   # (G, T)


# ---------------------------------------------------------------------------
# Parameters (torch-like init) + eval-mode BatchNorm folding
# ---------------------------------------------------------------------------
def init_basegnn_params(key, in_feats, hidden, task_num):
    ks = jax.random.split(key, 13)

    def linear(k, fan_in, shape):
        bound = 1.0 / jnp.sqrt(jnp.float32(fan_in))
        return jax.random.uniform(k, shape, jnp.float32, -bound, bound)

    def bn(k):
        kg, kb, km, kv = jax.random.split(k, 4)
        gamma = jax.random.uniform(kg, (task_num, hidden), jnp.float32, 0.5, 1.5)
        beta = 0.1 * jax.random.normal(kb, (task_num, hidden), jnp.float32)
        mean = 0.1 * jax.random.normal(km, (task_num, hidden), jnp.float32)
        var = jax.random.uniform(kv, (task_num, hidden), jnp.float32, 0.5, 1.5)
        return gamma, beta, mean, var

    return dict(
        W_ws=linear(ks[0], in_feats, (task_num + 1, in_feats)),   # WeightAndSum heads
        b_ws=linear(ks[1], in_feats, (task_num + 1,)),
        W1=linear(ks[2], in_feats, (task_num, hidden, in_feats)),
        b1=linear(ks[3], in_feats, (task_num, hidden)),
        W2=linear(ks[4], hidden, (task_num, hidden, hidden)),
        b2=linear(ks[5], hidden, (task_num, hidden)),
        W3=linear(ks[6], hidden, (task_num, hidden, hidden)),
        b3=linear(ks[7], hidden, (task_num, hidden)),
        Wo=linear(ks[8], hidden, (task_num, 1, hidden)),
        bo=linear(ks[9], hidden, (task_num, 1)),
        bn1=bn(ks[10]), bn2=bn(ks[11]), bn3=bn(ks[12]))


def fold_mlp_params(p, eps=1e-5):
    """Fold eval-mode BatchNorm1d into the following Linear:
         Lin(BN(z)) = Lin(z*s + o) = z @ (s[:,None]*A) + (o @ A + b),
       where s = gamma/sqrt(var+eps), o = beta - mean*s, A = W.T (so y = x @ A + b)."""
    def bn_scale_shift(bn):
        g, be, m, v = bn
        s = g * lax.rsqrt(v + eps)
        return s, be - m * s

    s1, o1 = bn_scale_shift(p["bn1"])
    s2, o2 = bn_scale_shift(p["bn2"])
    s3, o3 = bn_scale_shift(p["bn3"])

    A1 = jnp.swapaxes(p["W1"], 1, 2)                           # (T, D, H)
    A2t = jnp.swapaxes(p["W2"], 1, 2)                          # (T, H, H)
    A3t = jnp.swapaxes(p["W3"], 1, 2)
    A2 = s1[:, :, None] * A2t                                  # BN1 folded
    b2 = jnp.einsum("th,tho->to", o1, A2t) + p["b2"]
    A3 = s2[:, :, None] * A3t                                  # BN2 folded
    b3 = jnp.einsum("th,tho->to", o2, A3t) + p["b3"]
    wo = p["Wo"][:, 0, :]                                      # (T, H)
    Ao = s3 * wo                                               # BN3 folded
    bo = jnp.sum(o3 * wo, axis=1, keepdims=True) + p["bo"]     # (T, 1)

    return dict(
        A1=A1.astype(jnp.bfloat16), b1=p["b1"][:, None, :],
        A2=A2.astype(jnp.bfloat16), b2=b2[:, None, :],
        A3=A3.astype(jnp.bfloat16), b3=b3[:, None, :],
        Ao=Ao[:, None, :], bo=bo[:, None, :])


def mlp_heads_ref(mol_feats, fp):
    """Pure-JAX reference for kernel 2 (mirrors bf16 matmul operands, f32 accumulation)."""
    hi = lax.Precision.HIGHEST

    def layer(h, A, b):
        h16 = h.astype(jnp.bfloat16).astype(jnp.float32)
        return jnp.maximum(
            jnp.einsum("tgi,tio->tgo", h16, A.astype(jnp.float32), precision=hi) + b, 0.0)

    h = layer(mol_feats, fp["A1"], fp["b1"])
    h = layer(h, fp["A2"], fp["b2"])
    h = layer(h, fp["A3"], fp["b3"])
    pred = jnp.sum(h * fp["Ao"], axis=-1, keepdims=True) + fp["bo"]         # (T, G, 1)
    return pred[:, :, 0].T


if __name__ == "__main__":
    in_feats = 32        # gnn_out_feats (node feature dim)
    hidden = 128         # classifier_hidden_feats (torch default)
    task_num = 3
    G, N = 8, 8          # 8 graphs, 8 nodes each

    key = jax.random.PRNGKey(0)
    kf, kp = jax.random.split(key)
    feats = jax.random.normal(kf, (G, N, in_feats), jnp.float32)
    params = init_basegnn_params(kp, in_feats, hidden, task_num)
    folded = fold_mlp_params(params)

    # ---- BaseGNN.forward ----------------------------------------------------
    # gnn_layers is empty in BaseGNN -> node_feats pass through unchanged.
    readout = weight_and_sum(feats, params["W_ws"], params["b_ws"])   # (G, T+1, D)
    readout = jax.block_until_ready(readout)

    feat_list = [readout[:, i, :] for i in range(task_num)]   # attention=True path
    shared_feats_sum = readout[:, task_num, :]                # shared head (attention=False path)

    mol_feats = jnp.stack(feat_list, axis=0)                  # (T, G, D)
    prediction_all = mlp_heads(mol_feats, folded)             # (G, task_num)
    prediction_all = jax.block_until_ready(prediction_all)

    # ---- pure-JAX references --------------------------------------------------
    hi = lax.Precision.HIGHEST
    xr = feats.astype(jnp.bfloat16).astype(jnp.float32)
    wr = params["W_ws"].astype(jnp.bfloat16).astype(jnp.float32)
    logits_r = jnp.einsum("gnd,td->gnt", xr, wr, precision=hi) + params["b_ws"][None, None, :]
    readout_r = jnp.einsum("gnt,gnd->gtd", jax.nn.sigmoid(logits_r), xr, precision=hi)
    assert jnp.allclose(readout, readout_r, atol=1e-3, rtol=1e-3), \
        float(jnp.max(jnp.abs(readout - readout_r)))

    pred_r = mlp_heads_ref(mol_feats, folded)
    assert jnp.allclose(prediction_all, pred_r, atol=1e-2, rtol=1e-2), \
        float(jnp.max(jnp.abs(prediction_all - pred_r)))

    assert prediction_all.shape == (G, task_num)
    assert len(feat_list) == task_num and shared_feats_sum.shape == (G, in_feats)

    print("KERNEL_OK")
</pallas_src>

<mosaic_0001>
module attributes {stable_mosaic.version = 11 : i64} {
  func.func @weight_and_sum_kernel(%arg0: i32, %arg1: memref<64x128xbf16, #tpu.memory_space<vmem>>, %arg2: memref<4x128xbf16, #tpu.memory_space<vmem>>, %arg3: memref<1x4xf32, #tpu.memory_space<vmem>>, %arg4: memref<1x8x512xf32, #tpu.memory_space<vmem>>) attributes {dimension_semantics = [#tpu.dimension_semantics<parallel>], iteration_bounds = array<i64: 1>, scalar_prefetch = 0 : i64, scratch_operands = 0 : i64, tpu.core_type = #tpu.core_type<tc>, window_params = [{transform_indices = @transform_0, window_bounds = array<i64: 64, 128>}, {pipeline_mode = #tpu.pipeline_mode<synchronous>, transform_indices = @transform_1, window_bounds = array<i64: 4, 128>}, {pipeline_mode = #tpu.pipeline_mode<synchronous>, transform_indices = @transform_2, window_bounds = array<i64: 1, 4>}, {transform_indices = @transform_3, window_bounds = array<i64: 1, 8, 512>}]} {
    %c0 = arith.constant 0 : index
    %c0_0 = arith.constant 0 : index
    %0 = vector.load %arg1[%c0, %c0_0] : memref<64x128xbf16, #tpu.memory_space<vmem>>, vector<64x128xbf16>
    %c0_1 = arith.constant 0 : index
    %c0_2 = arith.constant 0 : index
    %1 = vector.load %arg2[%c0_1, %c0_2] : memref<4x128xbf16, #tpu.memory_space<vmem>>, vector<4x128xbf16>
    %cst = arith.constant dense<0.000000e+00> : vector<64x4xf32>
    %2 = tpu.matmul %0, %1, %cst {dimension_numbers = #tpu.dot_dimension_numbers<[1], [1], [0], [0], [0, 0, 1, 0], [], []>} : vector<64x128xbf16>, vector<4x128xbf16>, vector<64x4xf32> -> vector<64x4xf32>
    %c0_3 = arith.constant 0 : index
    %c0_4 = arith.constant 0 : index
    %3 = vector.load %arg3[%c0_3, %c0_4] : memref<1x4xf32, #tpu.memory_space<vmem>>, vector<1x4xf32>
    %4 = vector.broadcast %3 : vector<1x4xf32> to vector<64x4xf32>
    %5 = arith.addf %2, %4 : vector<64x4xf32>
    %6 = arith.negf %5 : vector<64x4xf32>
    %7 = math.exp %6 : vector<64x4xf32>
    %cst_5 = arith.constant 1.000000e+00 : f32
    %8 = vector.broadcast %cst_5 : f32 to vector<64x4xf32>
    %9 = arith.addf %8, %7 : vector<64x4xf32>
    %10 = arith.divf %8, %9 : vector<64x4xf32>
    %11 = vector.shape_cast %10 : vector<64x4xf32> to vector<8x8x4xf32>
    %12 = arith.extf %0 : vector<64x128xbf16> to vector<64x128xf32>
    %13 = vector.shape_cast %12 : vector<64x128xf32> to vector<8x8x128xf32>
    %14 = vector.extract_strided_slice %11 {offsets = [0, 0, 0], sizes = [8, 8, 1], strides = [1, 1, 1]} : vector<8x8x4xf32> to vector<8x8x1xf32>
    %15 = vector.broadcast %14 : vector<8x8x1xf32> to vector<8x8x128xf32>
    %16 = arith.mulf %15, %13 : vector<8x8x128xf32>
    %cst_6 = arith.constant dense<0.000000e+00> : vector<8x128xf32>
    %17 = vector.multi_reduction <add>, %16, %cst_6 [1] : vector<8x8x128xf32> to vector<8x128xf32>
    %c0_7 = arith.constant 0 : index
    %c0_8 = arith.constant 0 : index
    %c0_9 = arith.constant 0 : index
    %18 = vector.load %arg4[%c0_7, %c0_8, %c0_9] : memref<1x8x512xf32, #tpu.memory_space<vmem>>, vector<1x8x128xf32>
    %19 = vector.shape_cast %18 : vector<1x8x128xf32> to vector<8x128xf32>
    %20 = vector.shape_cast %17 : vector<8x128xf32> to vector<1x8x128xf32>
    tpu.vector_store %arg4[%c0_7, %c0_8, %c0_9], %20 {strides = array<i32>} : memref<1x8x512xf32, #tpu.memory_space<vmem>>, vector<1x8x128xf32>,
    %21 = vector.extract_strided_slice %11 {offsets = [0, 0, 1], sizes = [8, 8, 1], strides = [1, 1, 1]} : vector<8x8x4xf32> to vector<8x8x1xf32>
    %22 = vector.broadcast %21 : vector<8x8x1xf32> to vector<8x8x128xf32>
    %23 = arith.mulf %22, %13 : vector<8x8x128xf32>
    %cst_10 = arith.constant dense<0.000000e+00> : vector<8x128xf32>
    %24 = vector.multi_reduction <add>, %23, %cst_10 [1] : vector<8x8x128xf32> to vector<8x128xf32>
    %c0_11 = arith.constant 0 : index
    %c0_12 = arith.constant 0 : index
    %c128 = arith.constant 128 : index
    %25 = vector.load %arg4[%c0_11, %c0_12, %c128] : memref<1x8x512xf32, #tpu.memory_space<vmem>>, vector<1x8x128xf32>
    %26 = vector.shape_cast %25 : vector<1x8x128xf32> to vector<8x128xf32>
    %27 = vector.shape_cast %24 : vector<8x128xf32> to vector<1x8x128xf32>
    tpu.vector_store %arg4[%c0_11, %c0_12, %c128], %27 {strides = array<i32>} : memref<1x8x512xf32, #tpu.memory_space<vmem>>, vector<1x8x128xf32>,
    %28 = vector.extract_strided_slice %11 {offsets = [0, 0, 2], sizes = [8, 8, 1], strides = [1, 1, 1]} : vector<8x8x4xf32> to vector<8x8x1xf32>
    %29 = vector.broadcast %28 : vector<8x8x1xf32> to vector<8x8x128xf32>
    %30 = arith.mulf %29, %13 : vector<8x8x128xf32>
    %cst_13 = arith.constant dense<0.000000e+00> : vector<8x128xf32>
    %31 = vector.multi_reduction <add>, %30, %cst_13 [1] : vector<8x8x128xf32> to vector<8x128xf32>
    %c0_14 = arith.constant 0 : index
    %c0_15 = arith.constant 0 : index
    %c256 = arith.constant 256 : index
    %32 = vector.load %arg4[%c0_14, %c0_15, %c256] : memref<1x8x512xf32, #tpu.memory_space<vmem>>, vector<1x8x128xf32>
    %33 = vector.shape_cast %32 : vector<1x8x128xf32> to vector<8x128xf32>
    %34 = vector.shape_cast %31 : vector<8x128xf32> to vector<1x8x128xf32>
    tpu.vector_store %arg4[%c0_14, %c0_15, %c256], %34 {strides = array<i32>} : memref<1x8x512xf32, #tpu.memory_space<vmem>>, vector<1x8x128xf32>,
    %35 = vector.extract_strided_slice %11 {offsets = [0, 0, 3], sizes = [8, 8, 1], strides = [1, 1, 1]} : vector<8x8x4xf32> to vector<8x8x1xf32>
    %36 = vector.broadcast %35 : vector<8x8x1xf32> to vector<8x8x128xf32>
    %37 = arith.mulf %36, %13 : vector<8x8x128xf32>
    %cst_16 = arith.constant dense<0.000000e+00> : vector<8x128xf32>
    %38 = vector.multi_reduction <add>, %37, %cst_16 [1] : vector<8x8x128xf32> to vector<8x128xf32>
    %c0_17 = arith.constant 0 : index
    %c0_18 = arith.constant 0 : index
    %c384 = arith.constant 384 : index
    %39 = vector.load %arg4[%c0_17, %c0_18, %c384] : memref<1x8x512xf32, #tpu.memory_space<vmem>>, vector<1x8x128xf32>
    %40 = vector.shape_cast %39 : vector<1x8x128xf32> to vector<8x128xf32>
    %41 = vector.shape_cast %38 : vector<8x128xf32> to vector<1x8x128xf32>
    tpu.vector_store %arg4[%c0_17, %c0_18, %c384], %41 {strides = array<i32>} : memref<1x8x512xf32, #tpu.memory_space<vmem>>, vector<1x8x128xf32>,
    return
  }
  func.func @transform_0(%arg0: i32) -> (i32, i32) {
    %c0_i32 = arith.constant 0 : i32
    %c0_i32_0 = arith.constant 0 : i32
    return %arg0, %c0_i32 : i32, i32
  }
  func.func @transform_1(%arg0: i32) -> (i32, i32) {
    %c0_i32 = arith.constant 0 : i32
    %c0_i32_0 = arith.constant 0 : i32
    %c0_i32_1 = arith.constant 0 : i32
    return %c0_i32, %c0_i32_0 : i32, i32
  }
  func.func @transform_2(%arg0: i32) -> (i32, i32) {
    %c0_i32 = arith.constant 0 : i32
    %c0_i32_0 = arith.constant 0 : i32
    %c0_i32_1 = arith.constant 0 : i32
    return %c0_i32, %c0_i32_0 : i32, i32
  }
  func.func @transform_3(%arg0: i32) -> (i32, i32, i32) {
    %c0_i32 = arith.constant 0 : i32
    %c0_i32_0 = arith.constant 0 : i32
    %c0_i32_1 = arith.constant 0 : i32
    return %arg0, %c0_i32, %c0_i32_0 : i32, i32, i32
  }
}

</mosaic_0001>

<llo_original>
// kernel: tpu_custom_call.1
$region0: #{tpu_custom_call.1}
  #allocation0 [shape = 'u32[]', space=smem, size = 0x4, offset = 0x4, fixed_abs, tag = 'smem constant byte address 0x4 - core index']
  #allocation1 [shape = 'u32[72,128]{1,0:T(1,128)}', space=vmem, size = 0x9000, scoped, tag = 'internal scratch']
  %s0 = inlined_call_operand.hbm [shape: bf16[64,128], index: 0, kind: input, shape index: {}]
  %s1 = inlined_call_operand.hbm [shape: bf16[4,128], index: 1, kind: input, shape index: {}]
  %s2 = inlined_call_operand.vmem [shape: f32[1,4], index: 2, kind: input, shape index: {}]
  %s3 = inlined_call_operand.hbm [shape: f32[1,8,512], index: 3, kind: output, shape index: {}]
  %s4 = sld [smem:[#allocation0]]
  $region30: #{tpu_custom_call.1} parent=0
    _
  %s6 = ssub.s32 1, %s4
  %s7 = scalar_select 0, %s6, %s4
  $region1: #{tpu_custom_call.1} parent=0
    #allocation2 [shape = 'u8[16384]{0}', space=vmem, size = 0x4000, scoped, tag = 'input window, operand 0, single buffered']
    #allocation3 [shape = 's32[1]{0}', space=sflag, size = 0x4, scoped, tag = 'scoped memory for tpu_custom_call.1']
    #allocation4 [shape = 's32[1]{0}', space=sflag, size = 0x4, scoped, tag = 'scoped memory for tpu_custom_call.1']
    #allocation5 [shape = 'u8[1024]{0}', space=vmem, size = 0x400, scoped, tag = 'input window, operand 1, single buffered']
    #allocation6 [shape = 's32[1]{0}', space=sflag, size = 0x4, scoped, tag = 'scoped memory for tpu_custom_call.1']
    #allocation7 [shape = 'u8[16384]{0}', space=vmem, size = 0x4000, scoped, tag = 'output window, operand 0, single buffered']
    %8 = vsyncpa [#allocation3], 0
    %9 = vsyncpa [#allocation6], 0
    %10 = vsyncpa [#allocation4], 0
    // Predicated region
    $region2: #{tpu_custom_call.1} parent=1 // pred_check
      _
    $region3: #{tpu_custom_call.1} parent=1 // pred_check_branch
      %12 = sbr.rel (0) target = $region5
    $region4: #{tpu_custom_call.1} parent=1 // pred_region
      %14 = vsyncadd [#allocation3], 0
      %s15 = sshll.u32 %s0, 4
      %s16 = int_to_ptr.hbm [resolvable:$true] %s15
      %s17 = sshll.u32 [#allocation2], 4
      %s18 = int_to_ptr.vmem [resolvable:$true] %s17
      %23 = dma.hbm_to_vmem [thread:$0]  %s16, 512, %s18, [#allocation3], 64, 64, 4
    $region5: #{tpu_custom_call.1} parent=1 // pred_fallthru
      _
    // Predicated region
    $region6: #{tpu_custom_call.1} parent=1 // pred_check
      _
    $region7: #{tpu_custom_call.1} parent=1 // pred_check_branch
      %25 = sbr.rel (0) target = $region9
    $region8: #{tpu_custom_call.1} parent=1 // pred_region
      %27 = vsyncadd [#allocation6], 0
      %s29 = sshll.u32 %s1, 4
      %s30 = int_to_ptr.hbm [resolvable:$true] %s29
      %s31 = sshll.u32 [#allocation5], 4
      %s32 = int_to_ptr.vmem [resolvable:$true] %s31
      %34 = dma.hbm_to_vmem [thread:$0]  %s30, 32, %s32, [#allocation6]
    $region9: #{tpu_custom_call.1} parent=1 // pred_fallthru
      _
    // Predicated region
    $region10: #{tpu_custom_call.1} parent=1 // pred_check
      _
    $region11: #{tpu_custom_call.1} parent=1 // pred_check_branch
      %36 = sbr.rel (0) target = $region13
    $region12: #{tpu_custom_call.1} parent=1 // pred_region
      _
    $region13: #{tpu_custom_call.1} parent=1 // pred_fallthru
      _
    // Predicated region
    $region14: #{tpu_custom_call.1} parent=1 // pred_check
      _
    $region15: #{tpu_custom_call.1} parent=1 // pred_check_branch
      %38 = sbr.rel (0) target = $region17
    $region16: #{tpu_custom_call.1} parent=1 // pred_region
      %40 = dma.done [#allocation3], 512
    $region17: #{tpu_custom_call.1} parent=1 // pred_fallthru
      _
    // Predicated region
    $region18: #{tpu_custom_call.1} parent=1 // pred_check
      _
    $region19: #{tpu_custom_call.1} parent=1 // pred_check_branch
      %42 = sbr.rel (0) target = $region21
    $region20: #{tpu_custom_call.1} parent=1 // pred_region
      %44 = dma.done [#allocation6], 32
    $region21: #{tpu_custom_call.1} parent=1 // pred_fallthru
      _
    %v46 = vld [vmem:[#allocation2] sm:$0xf]
    %v47 = vld [vmem:[#allocation2 + $0x4] sm:$0xf]
    %v48 = vld [vmem:[#allocation2 + $0x8] sm:$0xf]
    %v49 = vld [vmem:[#allocation2 + $0xc] sm:$0xf]
    %v50 = vld [vmem:[#allocation2 + $0x10] sm:$0xf]
    %v51 = vld [vmem:[#allocation2 + $0x14] sm:$0xf]
    %v52 = vld [vmem:[#allocation2 + $0x18] sm:$0xf]
    %v53 = vld [vmem:[#allocation2 + $0x1c] sm:$0xf]
    %v54 = vld [vmem:[#allocation5] sm:$0x3]
    %v55 = vld [vmem:[%s2] sm:$0x1]
    %v57 = vperm.slane %v55, 0
    %v67 = vunpack.c.l.b16 %v46
    %v68 = vunpack.c.l.b16 %v47
    %v69 = vunpack.c.l.b16 %v48
    %v70 = vunpack.c.l.b16 %v49
    %v71 = vunpack.c.l.b16 %v50
    %v72 = vunpack.c.l.b16 %v51
    %v73 = vunpack.c.l.b16 %v52
    %v74 = vunpack.c.l.b16 %v53
    %v75 = vpack.c.b16 %v68, %v67
    %v76 = vpack.c.b16 %v70, %v69
    %v77 = vpack.c.b16 %v72, %v71
    %v78 = vpack.c.b16 %v74, %v73
    %83 = vmatpush.bf16.xpose.msra.mxu0 0
    %84 = vmatpush.bf16.xpose.msra.mxu0 0
    %85 = vmatpush.bf16.xpose.msra.mxu0 0
    %86 = vmatpush.bf16.xpose.msra.mxu0 0
    %87 = vmatpush.bf16.xpose.msra.mxu0 0
    %88 = vmatpush.bf16.xpose.msra.mxu0 0
    %89 = vmatpush.bf16.xpose.msra.mxu0 0
    %90 = vmatpush.bf16.xpose.msra.mxu0 %v54
    %91 = vmatmul.bf16.gmra.mxu0 %v75
    %v92 = vpop.f32.mrf.mxu0
    %v93 = vadd.f32 %v57, %v92
    %v94 = vpop.f32.mrf.mxu0
    %v95 = vadd.f32 %v57, %v94
    %96 = vmatmul.bf16.gmra.mxu0 %v76
    %v97 = vpop.f32.mrf.mxu0
    %v98 = vadd.f32 %v57, %v97
    %v99 = vpop.f32.mrf.mxu0
    %v100 = vadd.f32 %v57, %v99
    %101 = vmatmul.bf16.gmra.mxu0 %v77
    %v102 = vpop.f32.mrf.mxu0
    %v103 = vadd.f32 %v57, %v102
    %v104 = vpop.f32.mrf.mxu0
    %v105 = vadd.f32 %v57, %v104
    %106 = vmatmul.bf16.gmra.mxu0 %v78
    %v107 = vpop.f32.mrf.mxu0
    %v108 = vadd.f32 %v57, %v107
    %v109 = vpop.f32.mrf.mxu0
    %v110 = vadd.f32 %v57, %v109
    %111 = vdwg.mxu0
    %v112 = vxor.u32 %v93, 2147483648
    %v113 = vxor.u32 %v95, 2147483648
    %v114 = vxor.u32 %v98, 2147483648
    %v115 = vxor.u32 %v100, 2147483648
    %v116 = vxor.u32 %v103, 2147483648
    %v117 = vxor.u32 %v105, 2147483648
    %v118 = vxor.u32 %v108, 2147483648
    %v119 = vxor.u32 %v110, 2147483648
    %v120 = vmul.f32 %v112, 1.442695
    %v121 = vpow.pop %v120
    %v122 = vmul.f32 %v113, 1.442695
    %v123 = vpow.pop %v122
    %v124 = vmul.f32 %v114, 1.442695
    %v125 = vpow.pop %v124
    %v126 = vmul.f32 %v115, 1.442695
    %v127 = vpow.pop %v126
    %v128 = vmul.f32 %v116, 1.442695
    %v129 = vpow.pop %v128
    %v130 = vmul.f32 %v117, 1.442695
    %v131 = vpow.pop %v130
    %v132 = vmul.f32 %v118, 1.442695
    %v133 = vpow.pop %v132
    %v134 = vmul.f32 %v119, 1.442695
    %v135 = vpow.pop %v134
    %v136 = vadd.f32 %v121, 1.0
    %v137 = vadd.f32 %v123, 1.0
    %v138 = vadd.f32 %v125, 1.0
    %v139 = vadd.f32 %v127, 1.0
    %v140 = vadd.f32 %v129, 1.0
    %v141 = vadd.f32 %v131, 1.0
    %v142 = vadd.f32 %v133, 1.0
    %v143 = vadd.f32 %v135, 1.0
    %v144 = vrcp.pop %v136
    %v145 = vmul.f32 %v136, %v144
    %v146 = vsub.f32 1.0, %v145
    %v147 = vmul.f32 %v144, %v146
    %v148 = vadd.f32 %v144, %v147
    %vm149 = vweird.f32 %v136
    %vm150 = vweird.f32 %v144
    %vm151 = vmor %vm149, %vm150
    %v152 = vsel %vm151, %v144, %v148
    %v153 = vand.u32 2147483647, %v136
    %vm154 = vcmp.eq.f32.partialorder %v153, 8.507059e+37
    %v155 = vand.u32 %v136, 2147483648
    %v156 = vor.u32 1.1754944e-38, %v155
    %v157 = vsel %vm154, %v156, %v152
    %v158 = vmul.f32 1.0, %v157
    %v159 = vrcp.pop %v137
    %v160 = vmul.f32 %v137, %v159
    %v161 = vsub.f32 1.0, %v160
    %v162 = vmul.f32 %v159, %v161
    %v163 = vadd.f32 %v159, %v162
    %vm164 = vweird.f32 %v137
    %vm165 = vweird.f32 %v159
    %vm166 = vmor %vm164, %vm165
    %v167 = vsel %vm166, %v159, %v163
    %v168 = vand.u32 2147483647, %v137
    %vm169 = vcmp.eq.f32.partialorder %v168, 8.507059e+37
    %v170 = vand.u32 %v137, 2147483648
    %v171 = vor.u32 1.1754944e-38, %v170
    %v172 = vsel %vm169, %v171, %v167
    %v173 = vmul.f32 1.0, %v172
    %v174 = vrcp.pop %v138
    %v175 = vmul.f32 %v138, %v174
    %v176 = vsub.f32 1.0, %v175
    %v177 = vmul.f32 %v174, %v176
    %v178 = vadd.f32 %v174, %v177
    %vm179 = vweird.f32 %v138
    %vm180 = vweird.f32 %v174
    %vm181 = vmor %vm179, %vm180
    %v182 = vsel %vm181, %v174, %v178
    %v183 = vand.u32 2147483647, %v138
    %vm184 = vcmp.eq.f32.partialorder %v183, 8.507059e+37
    %v185 = vand.u32 %v138, 2147483648
    %v186 = vor.u32 1.1754944e-38, %v185
    %v187 = vsel %vm184, %v186, %v182
    %v188 = vmul.f32 1.0, %v187
    %v189 = vrcp.pop %v139
    %v190 = vmul.f32 %v139, %v189
    %v191 = vsub.f32 1.0, %v190
    %v192 = vmul.f32 %v189, %v191
    %v193 = vadd.f32 %v189, %v192
    %vm194 = vweird.f32 %v139
    %vm195 = vweird.f32 %v189
    %vm196 = vmor %vm194, %vm195
    %v197 = vsel %vm196, %v189, %v193
    %v198 = vand.u32 2147483647, %v139
    %vm199 = vcmp.eq.f32.partialorder %v198, 8.507059e+37
    %v200 = vand.u32 %v139, 2147483648
    %v201 = vor.u32 1.1754944e-38, %v200
    %v202 = vsel %vm199, %v201, %v197
    %v203 = vmul.f32 1.0, %v202
    %v204 = vrcp.pop %v140
    %v205 = vmul.f32 %v140, %v204
    %v206 = vsub.f32 1.0, %v205
    %v207 = vmul.f32 %v204, %v206
    %v208 = vadd.f32 %v204, %v207
    %vm209 = vweird.f32 %v140
    %vm210 = vweird.f32 %v204
    %vm211 = vmor %vm209, %vm210
    %v212 = vsel %vm211, %v204, %v208
    %v213 = vand.u32 2147483647, %v140
    %vm214 = vcmp.eq.f32.partialorder %v213, 8.507059e+37
    %v215 = vand.u32 %v140, 2147483648
    %v216 = vor.u32 1.1754944e-38, %v215
    %v217 = vsel %vm214, %v216, %v212
    %v218 = vmul.f32 1.0, %v217
    %v219 = vrcp.pop %v141
    %v220 = vmul.f32 %v141, %v219
    %v221 = vsub.f32 1.0, %v220
    %v222 = vmul.f32 %v219, %v221
    %v223 = vadd.f32 %v219, %v222
    %vm224 = vweird.f32 %v141
    %vm225 = vweird.f32 %v219
    %vm226 = vmor %vm224, %vm225
    %v227 = vsel %vm226, %v219, %v223
    %v228 = vand.u32 2147483647, %v141
    %vm229 = vcmp.eq.f32.partialorder %v228, 8.507059e+37
    %v230 = vand.u32 %v141, 2147483648
    %v231 = vor.u32 1.1754944e-38, %v230
    %v232 = vsel %vm229, %v231, %v227
    %v233 = vmul.f32 1.0, %v232
    %v234 = vrcp.pop %v142
    %v235 = vmul.f32 %v142, %v234
    %v236 = vsub.f32 1.0, %v235
    %v237 = vmul.f32 %v234, %v236
    %v238 = vadd.f32 %v234, %v237
    %vm239 = vweird.f32 %v142
    %vm240 = vweird.f32 %v234
    %vm241 = vmor %vm239, %vm240
    %v242 = vsel %vm241, %v234, %v238
    %v243 = vand.u32 2147483647, %v142
    %vm244 = vcmp.eq.f32.partialorder %v243, 8.507059e+37
    %v245 = vand.u32 %v142, 2147483648
    %v246 = vor.u32 1.1754944e-38, %v245
    %v247 = vsel %vm244, %v246, %v242
    %v248 = vmul.f32 1.0, %v247
    %v249 = vrcp.pop %v143
    %v250 = vmul.f32 %v143, %v249
    %v251 = vsub.f32 1.0, %v250
    %v252 = vmul.f32 %v249, %v251
    %v253 = vadd.f32 %v249, %v252
    %vm254 = vweird.f32 %v143
    %vm255 = vweird.f32 %v249
    %vm256 = vmor %vm254, %vm255
    %v257 = vsel %vm256, %v249, %v253
    %v258 = vand.u32 2147483647, %v143
    %vm259 = vcmp.eq.f32.partialorder %v258, 8.507059e+37
    %v260 = vand.u32 %v143, 2147483648
    %v261 = vor.u32 1.1754944e-38, %v260
    %v262 = vsel %vm259, %v261, %v257
    %v263 = vmul.f32 1.0, %v262
    %v264 = vunpack.c.l.bf16 %v46
    %v265 = vunpack.c.l.bf16 %v47
    %v266 = vunpack.c.l.bf16 %v48
    %v267 = vunpack.c.l.bf16 %v49
    %v268 = vunpack.c.l.bf16 %v50
    %v269 = vunpack.c.l.bf16 %v51
    %v270 = vunpack.c.l.bf16 %v52
    %v271 = vunpack.c.l.bf16 %v53
    %273 = vset.pattern.permute.xlu0 0
    %274 = vperm.xlu0 %273, %v158
    %v275 = vpop.permute.xlu0 %274
    %278 = vset.pattern.permute.xlu0 0
    %279 = vperm.xlu0 %278, %v173
    %v280 = vpop.permute.xlu0 %279
    %283 = vset.pattern.permute.xlu0 0
    %284 = vperm.xlu0 %283, %v188
    %v285 = vpop.permute.xlu0 %284
    %288 = vset.pattern.permute.xlu0 0
    %289 = vperm.xlu0 %288, %v203
    %v290 = vpop.permute.xlu0 %289
    %293 = vset.pattern.permute.xlu0 0
    %294 = vperm.xlu0 %293, %v218
    %v295 = vpop.permute.xlu0 %294
    %298 = vset.pattern.permute.xlu0 0
    %299 = vperm.xlu0 %298, %v233
    %v300 = vpop.permute.xlu0 %299
    %303 = vset.pattern.permute.xlu0 0
    %304 = vperm.xlu0 %303, %v248
    %v305 = vpop.permute.xlu0 %304
    %308 = vset.pattern.permute.xlu0 0
    %309 = vperm.xlu0 %308, %v263
    %v310 = vpop.permute.xlu0 %309
    %v312 = vmul.f32 %v275, %v264
    %v313 = vmul.f32 %v280, %v265
    %v314 = vmul.f32 %v285, %v266
    %v315 = vmul.f32 %v290, %v267
    %v316 = vmul.f32 %v295, %v268
    %v317 = vmul.f32 %v300, %v269
    %v318 = vmul.f32 %v305, %v270
    %v319 = vmul.f32 %v310, %v271
    %v320 = vrot.slane %v312, 4
    %v321 = vadd.f32 %v312, %v320
    %v322 = vrot.slane %v321, 2
    %v323 = vadd.f32 %v321, %v322
    %v324 = vrot.slane %v323, 1
    %v325 = vadd.f32 %v323, %v324
    %v326 = vrot.slane %v313, 4
    %v327 = vadd.f32 %v313, %v326
    %v328 = vrot.slane %v327, 2
    %v329 = vadd.f32 %v327, %v328
    %v330 = vrot.slane %v329, 1
    %v331 = vadd.f32 %v329, %v330
    %v332 = vrot.slane %v314, 4
    %v333 = vadd.f32 %v314, %v332
    %v334 = vrot.slane %v333, 2
    %v335 = vadd.f32 %v333, %v334
    %v336 = vrot.slane %v335, 1
    %v337 = vadd.f32 %v335, %v336
    %v338 = vrot.slane %v315, 4
    %v339 = vadd.f32 %v315, %v338
    %v340 = vrot.slane %v339, 2
    %v341 = vadd.f32 %v339, %v340
    %v342 = vrot.slane %v341, 1
    %v343 = vadd.f32 %v341, %v342
    %v344 = vrot.slane %v316, 4
    %v345 = vadd.f32 %v316, %v344
    %v346 = vrot.slane %v345, 2
    %v347 = vadd.f32 %v345, %v346
    %v348 = vrot.slane %v347, 1
    %v349 = vadd.f32 %v347, %v348
    %v350 = vrot.slane %v317, 4
    %v351 = vadd.f32 %v317, %v350
    %v352 = vrot.slane %v351, 2
    %v353 = vadd.f32 %v351, %v352
    %v354 = vrot.slane %v353, 1
    %v355 = vadd.f32 %v353, %v354
    %v356 = vrot.slane %v318, 4
    %v357 = vadd.f32 %v318, %v356
    %v358 = vrot.slane %v357, 2
    %v359 = vadd.f32 %v357, %v358
    %v360 = vrot.slane %v359, 1
    %v361 = vadd.f32 %v359, %v360
    %v362 = vrot.slane %v319, 4
    %v363 = vadd.f32 %v319, %v362
    %v364 = vrot.slane %v363, 2
    %v365 = vadd.f32 %v363, %v364
    %v366 = vrot.slane %v365, 1
    %v367 = vadd.f32 %v365, %v366
    %vm376 = vcmask 1041409
    %v377 = vsel %vm376, %v331, %v325
    %vm378 = vcmask 1042434
    %v379 = vsel %vm378, %v337, %v377
    %vm380 = vcmask 1043459
    %v381 = vsel %vm380, %v343, %v379
    %vm382 = vcmask 1044484
    %v383 = vsel %vm382, %v349, %v381
    %vm384 = vcmask 1045509
    %v385 = vsel %vm384, %v355, %v383
    %vm386 = vcmask 1046534
    %v387 = vsel %vm386, %v361, %v385
    %vm388 = vcmask 1047559
    %v389 = vsel %vm388, %v367, %v387
    %391 = vst [vmem:[#allocation7] sm:$0xff] %v389
    %392 = vset.pattern.permute.xlu0 1
    %393 = vperm.xlu0 %392, %v158
    %v394 = vpop.permute.xlu0 %393
    %396 = vset.pattern.permute.xlu0 1
    %397 = vperm.xlu0 %396, %v173
    %v398 = vpop.permute.xlu0 %397
    %400 = vset.pattern.permute.xlu0 1
    %401 = vperm.xlu0 %400, %v188
    %v402 = vpop.permute.xlu0 %401
    %404 = vset.pattern.permute.xlu0 1
    %405 = vperm.xlu0 %404, %v203
    %v406 = vpop.permute.xlu0 %405
    %408 = vset.pattern.permute.xlu0 1
    %409 = vperm.xlu0 %408, %v218
    %v410 = vpop.permute.xlu0 %409
    %412 = vset.pattern.permute.xlu0 1
    %413 = vperm.xlu0 %412, %v233
    %v414 = vpop.permute.xlu0 %413
    %416 = vset.pattern.permute.xlu0 1
    %417 = vperm.xlu0 %416, %v248
    %v418 = vpop.permute.xlu0 %417
    %420 = vset.pattern.permute.xlu0 1
    %421 = vperm.xlu0 %420, %v263
    %v422 = vpop.permute.xlu0 %421
    %v424 = vmul.f32 %v394, %v264
    %v425 = vmul.f32 %v398, %v265
    %v426 = vmul.f32 %v402, %v266
    %v427 = vmul.f32 %v406, %v267
    %v428 = vmul.f32 %v410, %v268
    %v429 = vmul.f32 %v414, %v269
    %v430 = vmul.f32 %v418, %v270
    %v431 = vmul.f32 %v422, %v271
    %v432 = vrot.slane %v424, 4
    %v433 = vadd.f32 %v424, %v432
    %v434 = vrot.slane %v433, 2
    %v435 = vadd.f32 %v433, %v434
    %v436 = vrot.slane %v435, 1
    %v437 = vadd.f32 %v435, %v436
    %v438 = vrot.slane %v425, 4
    %v439 = vadd.f32 %v425, %v438
    %v440 = vrot.slane %v439, 2
    %v441 = vadd.f32 %v439, %v440
    %v442 = vrot.slane %v441, 1
    %v443 = vadd.f32 %v441, %v442
    %v444 = vrot.slane %v426, 4
    %v445 = vadd.f32 %v426, %v444
    %v446 = vrot.slane %v445, 2
    %v447 = vadd.f32 %v445, %v446
    %v448 = vrot.slane %v447, 1
    %v449 = vadd.f32 %v447, %v448
    %v450 = vrot.slane %v427, 4
    %v451 = vadd.f32 %v427, %v450
    %v452 = vrot.slane %v451, 2
    %v453 = vadd.f32 %v451, %v452
    %v454 = vrot.slane %v453, 1
    %v455 = vadd.f32 %v453, %v454
    %v456 = vrot.slane %v428, 4
    %v457 = vadd.f32 %v428, %v456
    %v458 = vrot.slane %v457, 2
    %v459 = vadd.f32 %v457, %v458
    %v460 = vrot.slane %v459, 1
    %v461 = vadd.f32 %v459, %v460
    %v462 = vrot.slane %v429, 4
    %v463 = vadd.f32 %v429, %v462
    %v464 = vrot.slane %v463, 2
    %v465 = vadd.f32 %v463, %v464
    %v466 = vrot.slane %v465, 1
    %v467 = vadd.f32 %v465, %v466
    %v468 = vrot.slane %v430, 4
    %v469 = vadd.f32 %v430, %v468
    %v470 = vrot.slane %v469, 2
    %v471 = vadd.f32 %v469, %v470
    %v472 = vrot.slane %v471, 1
    %v473 = vadd.f32 %v471, %v472
    %v474 = vrot.slane %v431, 4
    %v475 = vadd.f32 %v431, %v474
    %v476 = vrot.slane %v475, 2
    %v477 = vadd.f32 %v475, %v476
    %v478 = vrot.slane %v477, 1
    %v479 = vadd.f32 %v477, %v478
    %v488 = vsel %vm376, %v443, %v437
    %v489 = vsel %vm378, %v449, %v488
    %v490 = vsel %vm380, %v455, %v489
    %v491 = vsel %vm382, %v461, %v490
    %v492 = vsel %vm384, %v467, %v491
    %v493 = vsel %vm386, %v473, %v492
    %v494 = vsel %vm388, %v479, %v493
    %496 = vst [vmem:[#allocation7 + $0x8] sm:$0xff] %v494
    %497 = vset.pattern.permute.xlu0 2
    %498 = vperm.xlu0 %497, %v158
    %v499 = vpop.permute.xlu0 %498
    %501 = vset.pattern.permute.xlu0 2
    %502 = vperm.xlu0 %501, %v173
    %v503 = vpop.permute.xlu0 %502
    %505 = vset.pattern.permute.xlu0 2
    %506 = vperm.xlu0 %505, %v188
    %v507 = vpop.permute.xlu0 %506
    %509 = vset.pattern.permute.xlu0 2
    %510 = vperm.xlu0 %509, %v203
    %v511 = vpop.permute.xlu0 %510
    %513 = vset.pattern.permute.xlu0 2
    %514 = vperm.xlu0 %513, %v218
    %v515 = vpop.permute.xlu0 %514
    %517 = vset.pattern.permute.xlu0 2
    %518 = vperm.xlu0 %517, %v233
    %v519 = vpop.permute.xlu0 %518
    %521 = vset.pattern.permute.xlu0 2
    %522 = vperm.xlu0 %521, %v248
    %v523 = vpop.permute.xlu0 %522
    %525 = vset.pattern.permute.xlu0 2
    %526 = vperm.xlu0 %525, %v263
    %v527 = vpop.permute.xlu0 %526
    %v529 = vmul.f32 %v499, %v264
    %v530 = vmul.f32 %v503, %v265
    %v531 = vmul.f32 %v507, %v266
    %v532 = vmul.f32 %v511, %v267
    %v533 = vmul.f32 %v515, %v268
    %v534 = vmul.f32 %v519, %v269
    %v535 = vmul.f32 %v523, %v270
    %v536 = vmul.f32 %v527, %v271
    %v537 = vrot.slane %v529, 4
    %v538 = vadd.f32 %v529, %v537
    %v539 = vrot.slane %v538, 2
    %v540 = vadd.f32 %v538, %v539
    %v541 = vrot.slane %v540, 1
    %v542 = vadd.f32 %v540, %v541
    %v543 = vrot.slane %v530, 4
    %v544 = vadd.f32 %v530, %v543
    %v545 = vrot.slane %v544, 2
    %v546 = vadd.f32 %v544, %v545
    %v547 = vrot.slane %v546, 1
    %v548 = vadd.f32 %v546, %v547
    %v549 = vrot.slane %v531, 4
    %v550 = vadd.f32 %v531, %v549
    %v551 = vrot.slane %v550, 2
    %v552 = vadd.f32 %v550, %v551
    %v553 = vrot.slane %v552, 1
    %v554 = vadd.f32 %v552, %v553
    %v555 = vrot.slane %v532, 4
    %v556 = vadd.f32 %v532, %v555
    %v557 = vrot.slane %v556, 2
    %v558 = vadd.f32 %v556, %v557
    %v559 = vrot.slane %v558, 1
    %v560 = vadd.f32 %v558, %v559
    %v561 = vrot.slane %v533, 4
    %v562 = vadd.f32 %v533, %v561
    %v563 = vrot.slane %v562, 2
    %v564 = vadd.f32 %v562, %v563
    %v565 = vrot.slane %v564, 1
    %v566 = vadd.f32 %v564, %v565
    %v567 = vrot.slane %v534, 4
    %v568 = vadd.f32 %v534, %v567
    %v569 = vrot.slane %v568, 2
    %v570 = vadd.f32 %v568, %v569
    %v571 = vrot.slane %v570, 1
    %v572 = vadd.f32 %v570, %v571
    %v573 = vrot.slane %v535, 4
    %v574 = vadd.f32 %v535, %v573
    %v575 = vrot.slane %v574, 2
    %v576 = vadd.f32 %v574, %v575
    %v577 = vrot.slane %v576, 1
    %v578 = vadd.f32 %v576, %v577
    %v579 = vrot.slane %v536, 4
    %v580 = vadd.f32 %v536, %v579
    %v581 = vrot.slane %v580, 2
    %v582 = vadd.f32 %v580, %v581
    %v583 = vrot.slane %v582, 1
    %v584 = vadd.f32 %v582, %v583
    %v593 = vsel %vm376, %v548, %v542
    %v594 = vsel %vm378, %v554, %v593
    %v595 = vsel %vm380, %v560, %v594
    %v596 = vsel %vm382, %v566, %v595
    %v597 = vsel %vm384, %v572, %v596
    %v598 = vsel %vm386, %v578, %v597
    %v599 = vsel %vm388, %v584, %v598
    %601 = vst [vmem:[#allocation7 + $0x10] sm:$0xff] %v599
    %602 = vset.pattern.permute.xlu0 3
    %603 = vperm.xlu0 %602, %v158
    %v604 = vpop.permute.xlu0 %603
    %606 = vset.pattern.permute.xlu0 3
    %607 = vperm.xlu0 %606, %v173
    %v608 = vpop.permute.xlu0 %607
    %610 = vset.pattern.permute.xlu0 3
    %611 = vperm.xlu0 %610, %v188
    %v612 = vpop.permute.xlu0 %611
    %614 = vset.pattern.permute.xlu0 3
    %615 = vperm.xlu0 %614, %v203
    %v616 = vpop.permute.xlu0 %615
    %618 = vset.pattern.permute.xlu0 3
    %619 = vperm.xlu0 %618, %v218
    %v620 = vpop.permute.xlu0 %619
    %622 = vset.pattern.permute.xlu0 3
    %623 = vperm.xlu0 %622, %v233
    %v624 = vpop.permute.xlu0 %623
    %626 = vset.pattern.permute.xlu0 3
    %627 = vperm.xlu0 %626, %v248
    %v628 = vpop.permute.xlu0 %627
    %630 = vset.pattern.permute.xlu0 3
    %631 = vperm.xlu0 %630, %v263
    %v632 = vpop.permute.xlu0 %631
    %v634 = vmul.f32 %v604, %v264
    %v635 = vmul.f32 %v608, %v265
    %v636 = vmul.f32 %v612, %v266
    %v637 = vmul.f32 %v616, %v267
    %v638 = vmul.f32 %v620, %v268
    %v639 = vmul.f32 %v624, %v269
    %v640 = vmul.f32 %v628, %v270
    %v641 = vmul.f32 %v632, %v271
    %v642 = vrot.slane %v634, 4
    %v643 = vadd.f32 %v634, %v642
    %v644 = vrot.slane %v643, 2
    %v645 = vadd.f32 %v643, %v644
    %v646 = vrot.slane %v645, 1
    %v647 = vadd.f32 %v645, %v646
    %v648 = vrot.slane %v635, 4
    %v649 = vadd.f32 %v635, %v648
    %v650 = vrot.slane %v649, 2
    %v651 = vadd.f32 %v649, %v650
    %v652 = vrot.slane %v651, 1
    %v653 = vadd.f32 %v651, %v652
    %v654 = vrot.slane %v636, 4
    %v655 = vadd.f32 %v636, %v654
    %v656 = vrot.slane %v655, 2
    %v657 = vadd.f32 %v655, %v656
    %v658 = vrot.slane %v657, 1
    %v659 = vadd.f32 %v657, %v658
    %v660 = vrot.slane %v637, 4
    %v661 = vadd.f32 %v637, %v660
    %v662 = vrot.slane %v661, 2
    %v663 = vadd.f32 %v661, %v662
    %v664 = vrot.slane %v663, 1
    %v665 = vadd.f32 %v663, %v664
    %v666 = vrot.slane %v638, 4
    %v667 = vadd.f32 %v638, %v666
    %v668 = vrot.slane %v667, 2
    %v669 = vadd.f32 %v667, %v668
    %v670 = vrot.slane %v669, 1
    %v671 = vadd.f32 %v669, %v670
    %v672 = vrot.slane %v639, 4
    %v673 = vadd.f32 %v639, %v672
    %v674 = vrot.slane %v673, 2
    %v675 = vadd.f32 %v673, %v674
    %v676 = vrot.slane %v675, 1
    %v677 = vadd.f32 %v675, %v676
    %v678 = vrot.slane %v640, 4
    %v679 = vadd.f32 %v640, %v678
    %v680 = vrot.slane %v679, 2
    %v681 = vadd.f32 %v679, %v680
    %v682 = vrot.slane %v681, 1
    %v683 = vadd.f32 %v681, %v682
    %v684 = vrot.slane %v641, 4
    %v685 = vadd.f32 %v641, %v684
    %v686 = vrot.slane %v685, 2
    %v687 = vadd.f32 %v685, %v686
    %v688 = vrot.slane %v687, 1
    %v689 = vadd.f32 %v687, %v688
    %v698 = vsel %vm376, %v653, %v647
    %v699 = vsel %vm378, %v659, %v698
    %v700 = vsel %vm380, %v665, %v699
    %v701 = vsel %vm382, %v671, %v700
    %v702 = vsel %vm384, %v677, %v701
    %v703 = vsel %vm386, %v683, %v702
    %v704 = vsel %vm388, %v689, %v703
    %706 = vst [vmem:[#allocation7 + $0x18] sm:$0xff] %v704
    // Predicated region
    $region22: #{tpu_custom_call.1} parent=1 // pred_check
      _
    $region23: #{tpu_custom_call.1} parent=1 // pred_check_branch
      %708 = sbr.rel (0) target = $region25
    $region24: #{tpu_custom_call.1} parent=1 // pred_region
      %710 = vsyncadd [#allocation4], 0
      %s712 = sshll.u32 [#allocation7], 4
      %s713 = int_to_ptr.vmem [resolvable:$true] %s712
      %s714 = sshll.u32 %s3, 4
      %s715 = int_to_ptr.hbm [resolvable:$true] %s714
      %717 = dma.vmem_to_hbm [thread:$0]  %s713, 512, %s715, [#allocation4]
    $region25: #{tpu_custom_call.1} parent=1 // pred_fallthru
      _
    // Predicated region
    $region26: #{tpu_custom_call.1} parent=1 // pred_check
      _
    $region27: #{tpu_custom_call.1} parent=1 // pred_check_branch
      %719 = sbr.rel (0) target = $region29
    $region28: #{tpu_custom_call.1} parent=1 // pred_region
      %721 = dma.done [#allocation4], 512
    $region29: #{tpu_custom_call.1} parent=1 // pred_fallthru
      _
    %722 = vsyncpa [#allocation3], 1
    %723 = vsyncpa [#allocation6], 1
    %724 = vsyncpa [#allocation4], 1

</llo_original>
